<compile_context>
chip_gen: v5e
topology: v5e:2x2
jax: 0.10.0
libtpu: 0.0.40
codegen_flags: <defaults>
</compile_context>

<pallas_src>
import functools
from dataclasses import dataclass
from typing import Callable, Optional

import jax
import jax.numpy as jnp
from jax.experimental import pallas as pl
from jax.experimental.pallas import tpu as pltpu


@dataclass
class Config:
    n_classes: int
    objective_class_id: Optional[int]  # None -> take max over classes
    loss_target: Callable              # e.g. lambda obj, cls: obj * cls (elementwise)


def _round_up(x: int, m: int) -> int:
    return ((x + m - 1) // m) * m


def _max_prob_kernel(x_ref, o_ref, *, n_classes, objective_class_id, loss_target,
                     n_valid, tile_a, tiles_per_split, needs_mask, approx_recip):
    """x_ref: (1, tile_a, 5+nc) raw YOLO block (anchors on sublanes).
       o_ref: (1, 1, 8, 128) running-max accumulator / output block."""
    j = pl.program_id(2)

    @pl.when(j == 0)
    def _init():
        o_ref[...] = jnp.full(o_ref.shape, -jnp.inf, o_ref.dtype)

    # Column select + class reduce happen in-kernel; bf16 inputs are upcast here.
    x = x_ref[0].astype(jnp.float32)                       # (tile_a, 5+nc)
    objectness = x[:, 4:5]                                 # (tile_a, 1)
    class_confs = x[:, 5:5 + n_classes]                    # (tile_a, nc)

    if objective_class_id is not None:
        # Numerically-stable softmax over the class (lane) axis; only the target
        # class probability is materialized.
        m = jnp.max(class_confs, axis=1, keepdims=True)    # (tile_a, 1)
        e = jnp.exp(class_confs - m)                       # (tile_a, nc)
        denom = jnp.sum(e, axis=1, keepdims=True)          # (tile_a, 1)
        cls = (e[:, objective_class_id:objective_class_id + 1]
               * pl.reciprocal(denom, approx=approx_recip))  # (tile_a, 1)
    else:
        cls = jnp.max(class_confs, axis=1, keepdims=True)  # (tile_a, 1)

    confs = loss_target(objectness, cls)                   # (tile_a, 1)

    if needs_mask:
        # Only compiled in when some tile can spill past N (ragged N and/or
        # ragged split partitioning); neutralizes garbage rows of partial blocks
        # and fully-out-of-range (clamped) tiles.  Works for any loss_target
        # because the mask is applied after it and before the max.
        tile_idx = pl.program_id(1) * tiles_per_split + j
        row = jax.lax.broadcasted_iota(jnp.int32, confs.shape, 0)
        confs = jnp.where(tile_idx * tile_a + row < n_valid, confs, -jnp.inf)

    # Per-tile reduce (hidden under the block DMA), running max kept in the
    # resident output block across the innermost ("arbitrary") grid axis.
    o_ref[...] = jnp.maximum(o_ref[...], jnp.max(confs))


def max_prob_extractor(x: jax.Array, config: Config, *,
                       tile_anchors: int = 8192,
                       num_anchor_splits: int = 1,
                       approx_recip: bool = True) -> jax.Array:
    """x: [B, N, 5 + n_classes] (f32 or bf16) -> [B] f32.

    tile_anchors:      anchors per block; ~8192 (~0.5 MB for nc=11) amortizes the
                       per-grid-step overhead on v5e/v6e; 16-32k is fine on v7x.
    num_anchor_splits: keep 1 on single-TensorCore parts (v5e/v6e); set 2 on v7x
                       only when batch alone cannot feed both cores.
    """
    B, N, C = x.shape
    nc = config.n_classes
    if C != 5 + nc:
        raise ValueError(f"expected last dim {5 + nc}, got {C}")

    splits = max(1, int(num_anchor_splits))

    # Anchor tile: multiple of 8 (sublane granularity), clamped so tiny N is not
    # over-tiled. Last dim of the block equals the full array dim (C), so no
    # transpose / pad pre-pass is needed.
    tile_a = max(8, (int(tile_anchors) // 8) * 8)
    tile_a = min(tile_a, _round_up(pl.cdiv(N, splits), 8))
    total_tiles = pl.cdiv(N, tile_a)
    tiles_per_split = pl.cdiv(total_tiles, splits)
    needs_mask = (splits * tiles_per_split * tile_a) != N

    def in_index_map(b, c, j, tps=tiles_per_split, tmax=total_tiles - 1):
        # Clamp fully-out-of-range tiles (ragged split partitioning); the kernel
        # masks them to -inf with the *unclamped* logical index, so duplicates
        # never change the max.
        return (b, jnp.minimum(c * tps + j, tmax), 0)

    kernel = functools.partial(
        _max_prob_kernel,
        n_classes=nc,
        objective_class_id=config.objective_class_id,
        loss_target=config.loss_target,
        n_valid=N,
        tile_a=tile_a,
        tiles_per_split=tiles_per_split,
        needs_mask=needs_mask,
        approx_recip=approx_recip,
    )

    out = pl.pallas_call(
        kernel,
        out_shape=jax.ShapeDtypeStruct((B, splits, 8, 128), jnp.float32),
        grid_spec=pltpu.PrefetchScalarGridSpec(
            num_scalar_prefetch=0,
            grid=(B, splits, tiles_per_split),
            in_specs=[pl.BlockSpec((1, tile_a, C), in_index_map)],
            out_specs=pl.BlockSpec((1, 1, 8, 128), lambda b, c, j: (b, c, 0, 0)),
        ),
        compiler_params=pltpu.CompilerParams(
            dimension_semantics=("parallel", "parallel", "arbitrary"),
        ),
    )(x)

    # Combine per-split partial maxes (trivial when splits == 1).
    return jnp.max(out[:, :, 0, 0], axis=1)


def _reference(x: jax.Array, config: Config) -> jax.Array:
    class_confs = x[:, :, 5:5 + config.n_classes]
    objectness = x[:, :, 4]
    if config.objective_class_id is not None:
        class_confs = jax.nn.softmax(class_confs, axis=2)
        class_confs = class_confs[:, :, config.objective_class_id]
    else:
        class_confs = jnp.max(class_confs, axis=2)
    confs_if_object = config.loss_target(objectness, class_confs)
    return jnp.max(confs_if_object, axis=1)


if __name__ == "__main__":
    key = jax.random.PRNGKey(0)
    B, N, n_cls = 2, 200, 11                      # x shape [2, 200, 16]
    x = jax.random.normal(key, (B, N, 5 + n_cls), dtype=jnp.float32)

    mul = lambda obj, cls: obj * cls

    # Path 1: objective_class_id set -> softmax over classes, pick class 1.
    cfg_softmax = Config(n_classes=n_cls, objective_class_id=1, loss_target=mul)
    ref1 = _reference(x, cfg_softmax)
    out1 = jax.block_until_ready(max_prob_extractor(x, cfg_softmax))  # approx recip
    assert jnp.allclose(out1, ref1, atol=1e-2, rtol=1e-2), (out1, ref1)
    out1e = jax.block_until_ready(
        max_prob_extractor(x, cfg_softmax, approx_recip=False))       # exact recip
    assert jnp.allclose(out1e, ref1, atol=1e-5, rtol=1e-5), (out1e, ref1)

    # Path 2: objective_class_id is None -> max over classes.
    cfg_max = Config(n_classes=n_cls, objective_class_id=None, loss_target=mul)
    ref2 = _reference(x, cfg_max)
    out2 = jax.block_until_ready(max_prob_extractor(x, cfg_max))
    assert jnp.allclose(out2, ref2, atol=1e-5, rtol=1e-5), (out2, ref2)

    # Path 3: ragged tiling + anchor splits (exercises the -inf mask, the
    # out-of-range tile clamp, and the per-split combine), no padding pass.
    out3 = jax.block_until_ready(
        max_prob_extractor(x, cfg_max, tile_anchors=64, num_anchor_splits=2))
    assert jnp.allclose(out3, ref2, atol=1e-5, rtol=1e-5), (out3, ref2)

    print("KERNEL_OK")
</pallas_src>

<mosaic_0001>
module attributes {stable_mosaic.version = 11 : i64} {
  func.func @_max_prob_kernel(%arg0: i32, %arg1: i32, %arg2: i32, %arg3: memref<1x200x16xf32, #tpu.memory_space<vmem>>, %arg4: memref<1x1x8x128xf32, #tpu.memory_space<vmem>>) attributes {dimension_semantics = [#tpu.dimension_semantics<parallel>, #tpu.dimension_semantics<parallel>, #tpu.dimension_semantics<arbitrary>], iteration_bounds = array<i64: 2, 1, 1>, scalar_prefetch = 0 : i64, scratch_operands = 0 : i64, tpu.core_type = #tpu.core_type<tc>, window_params = [{transform_indices = @transform_0, window_bounds = array<i64: 1, 200, 16>}, {transform_indices = @transform_1, window_bounds = array<i64: 1, 1, 8, 128>}]} {
    %c0_i32 = arith.constant 0 : i32
    %0 = arith.cmpi eq, %arg2, %c0_i32 : i32
    %1 = arith.extui %0 : i1 to i32
    %c0_i32_0 = arith.constant 0 : i32
    %2 = arith.cmpi ne, %1, %c0_i32_0 : i32
    scf.if %2 {
      %cst_13 = arith.constant 0xFF800000 : f32
      %26 = vector.broadcast %cst_13 : f32 to vector<1x1x8x128xf32>
      %c0_14 = arith.constant 0 : index
      %c0_15 = arith.constant 0 : index
      %c0_16 = arith.constant 0 : index
      %c0_17 = arith.constant 0 : index
      %27 = vector.load %arg4[%c0_14, %c0_15, %c0_16, %c0_17] : memref<1x1x8x128xf32, #tpu.memory_space<vmem>>, vector<1x1x8x128xf32>
      tpu.vector_store %arg4[%c0_14, %c0_15, %c0_16, %c0_17], %26 {strides = array<i32>} : memref<1x1x8x128xf32, #tpu.memory_space<vmem>>, vector<1x1x8x128xf32>,
    } else {
    }
    %c0 = arith.constant 0 : index
    %c0_1 = arith.constant 0 : index
    %c0_2 = arith.constant 0 : index
    %3 = vector.load %arg3[%c0, %c0_1, %c0_2] : memref<1x200x16xf32, #tpu.memory_space<vmem>>, vector<1x200x16xf32>
    %4 = vector.shape_cast %3 : vector<1x200x16xf32> to vector<200x16xf32>
    %5 = vector.extract_strided_slice %4 {offsets = [0, 4], sizes = [200, 1], strides = [1, 1]} : vector<200x16xf32> to vector<200x1xf32>
    %6 = vector.extract_strided_slice %4 {offsets = [0, 5], sizes = [200, 11], strides = [1, 1]} : vector<200x16xf32> to vector<200x11xf32>
    %cst = arith.constant dense<0xFF800000> : vector<200xf32>
    %7 = vector.multi_reduction <maximumf>, %6, %cst [1] : vector<200x11xf32> to vector<200xf32>
    %8 = vector.shape_cast %7 : vector<200xf32> to vector<200x1xf32>
    %9 = vector.broadcast %8 : vector<200x1xf32> to vector<200x11xf32>
    %10 = arith.subf %6, %9 : vector<200x11xf32>
    %11 = math.exp %10 : vector<200x11xf32>
    %cst_3 = arith.constant dense<0.000000e+00> : vector<200xf32>
    %12 = vector.multi_reduction <add>, %11, %cst_3 [1] : vector<200x11xf32> to vector<200xf32>
    %13 = vector.shape_cast %12 : vector<200xf32> to vector<200x1xf32>
    %14 = vector.extract_strided_slice %11 {offsets = [0, 1], sizes = [200, 1], strides = [1, 1]} : vector<200x11xf32> to vector<200x1xf32>
    %15 = tpu.reciprocal %13 {approx = true} : vector<200x1xf32> -> vector<200x1xf32>
    %16 = arith.mulf %14, %15 : vector<200x1xf32>
    %17 = arith.mulf %5, %16 : vector<200x1xf32>
    %c0_4 = arith.constant 0 : index
    %c0_5 = arith.constant 0 : index
    %c0_6 = arith.constant 0 : index
    %c0_7 = arith.constant 0 : index
    %18 = vector.load %arg4[%c0_4, %c0_5, %c0_6, %c0_7] : memref<1x1x8x128xf32, #tpu.memory_space<vmem>>, vector<1x1x8x128xf32>
    %19 = vector.shape_cast %17 : vector<200x1xf32> to vector<1x200x1xf32>
    %cst_8 = arith.constant dense<0xFF800000> : vector<1xf32>
    %20 = vector.multi_reduction <maximumf>, %19, %cst_8 [1, 2] : vector<1x200x1xf32> to vector<1xf32>
    %21 = vector.shape_cast %20 : vector<1xf32> to vector<1x1x1xf32>
    %22 = vector.extract %21[0, 0, 0] : f32 from vector<1x1x1xf32>
    %23 = vector.broadcast %22 : f32 to vector<1x1x8x128xf32>
    %24 = arith.maximumf %18, %23 : vector<1x1x8x128xf32>
    %c0_9 = arith.constant 0 : index
    %c0_10 = arith.constant 0 : index
    %c0_11 = arith.constant 0 : index
    %c0_12 = arith.constant 0 : index
    %25 = vector.load %arg4[%c0_9, %c0_10, %c0_11, %c0_12] : memref<1x1x8x128xf32, #tpu.memory_space<vmem>>, vector<1x1x8x128xf32>
    tpu.vector_store %arg4[%c0_9, %c0_10, %c0_11, %c0_12], %24 {strides = array<i32>} : memref<1x1x8x128xf32, #tpu.memory_space<vmem>>, vector<1x1x8x128xf32>,
    return
  }
  func.func @transform_0(%arg0: i32, %arg1: i32, %arg2: i32) -> (i32, i32, i32) {
    %c1_i32 = arith.constant 1 : i32
    %0 = arith.muli %arg1, %c1_i32 : i32
    %1 = arith.addi %0, %arg2 : i32
    %c0_i32 = arith.constant 0 : i32
    %2 = arith.minsi %1, %c0_i32 : i32
    %c0_i32_0 = arith.constant 0 : i32
    %c0_i32_1 = arith.constant 0 : i32
    return %arg0, %2, %c0_i32_0 : i32, i32, i32
  }
  func.func @transform_1(%arg0: i32, %arg1: i32, %arg2: i32) -> (i32, i32, i32, i32) {
    %c0_i32 = arith.constant 0 : i32
    %c0_i32_0 = arith.constant 0 : i32
    %c0_i32_1 = arith.constant 0 : i32
    return %arg0, %arg1, %c0_i32, %c0_i32_0 : i32, i32, i32, i32
  }
}

</mosaic_0001>

<llo_original>
// kernel: tpu_custom_call.1
$region0: #{tpu_custom_call.1}
  #allocation0 [shape = 'u32[]', space=smem, size = 0x4, offset = 0x4, fixed_abs, tag = 'smem constant byte address 0x4 - core index']
  #allocation1 [shape = 'u32[72,128]{1,0:T(1,128)}', space=vmem, size = 0x9000, scoped, tag = 'internal scratch']
  %s0 = inlined_call_operand.vmem [shape: f32[2,200,16], index: 0, kind: input, shape index: {}]
  %s1 = inlined_call_operand.hbm [shape: f32[2,1,8,128], index: 1, kind: output, shape index: {}]
  %s2 = sld [smem:[#allocation0]]
  $region41: #{tpu_custom_call.1} parent=0
    _
  %s4 = ssub.s32 1, %s2
  %s5 = scalar_select 0, %s4, %s2
  $region1: #{tpu_custom_call.1} parent=0
    #allocation2 [shape = 'u8[8192]{0}', space=vmem, size = 0x2000, scoped, tag = 'output window, operand 0']
    #allocation3 [shape = 's32[2]{0}', space=sflag, size = 0x8, scoped, tag = 'scoped memory for tpu_custom_call.1']
    %6 = vsyncpa [#allocation3], 0
    %s7 = scalar_lea.sflag [#allocation3], 1
    %8 = vsyncpa %s7, 0
    loop: start=0, step=1, limit=4
    $region2: #{tpu_custom_call.1} parent=1 // loop_pre_header
      _
    $region3: #{tpu_custom_call.1} parent=1 // loop_header
      %s10 = sphi 0, %s14
      %p11 = scmp.ge.s32.totalorder %s10, 4
      %s17 = sphi 0, %s36
      %s18 = sphi 0, %s32
      %s19 = sphi 0, %s28
      %s20 = sphi 0, %s17
      %s21 = sphi 0, %s18
      %s22 = sphi 0, %s19
      %s23 = sphi 0, %s20
      %s24 = sphi 0, %s21
      %s25 = sphi 0, %s22
      %s47 = sphi 0, %s49
      %s50 = sphi 0, %s47
      %s51 = sphi 0, %s50
      %s67 = sphi 0, %s51
      %s75 = sphi 0, %s77
      %s78 = sphi 0, %s75
      %s79 = sphi 0, %s78
      %s95 = sphi 0, %s79
    $region4: #{tpu_custom_call.1} parent=1 // loop_header_branch
      %13 = sbr.rel (%p11) target = $region8
    $region5: #{tpu_custom_call.1} parent=1 // loop_body
      %s15 = ssub.s32 %s10, 1
      %s16 = ssub.s32 %s10, 2
      %s26 = sadd.s32 1, %s19
      %p27 = scmp.ge.s32.totalorder %s26, 1
      %s28 = scalar_select %p27, 0, %s26
      %s29 = sadd.s32 1, %s18
      %s30 = scalar_select %p27, %s29, %s18
      %p31 = scmp.ge.s32.totalorder %s30, 1
      %s32 = scalar_select %p31, 0, %s30
      %s33 = sadd.s32 1, %s17
      %s34 = scalar_select %p31, %s33, %s17
      %p35 = scmp.ge.s32.totalorder %s34, 2
      %s36 = scalar_select %p35, 0, %s34
      %s37 = sadd.s32 %s18, %s19
      %p38 = scmp.lt.s32.totalorder %s37, 0
      %s39 = scalar_select %p38, %s37, 0
      %s40 = sadd.s32 %s32, %s28
      %p41 = scmp.lt.s32.totalorder %s40, 0
      %s42 = scalar_select %p41, %s40, 0
      %s43 = ssub.s32 %s17, %s36
      %s44 = ssub.s32 %s39, %s42
      %s45 = sor.u32 %s43, %s44
      %p46 = scmp.eq.s32.totalorder %s45, 0
      %s48 = sadd.s32 %s47, 1
      %s49 = scalar_select %p46, %s47, %s48
      %p52 = pneg %p46
      %p53 = scmp.eq.s32.totalorder %s10, 1
      %p54 = por %p52, %p53
      %p55 = scmp.ne.s32.totalorder %s47, %s50
      %p56 = scmp.eq.s32.totalorder %s10, 0
      %p57 = por %p55, %p56
      %p58 = scmp.ne.s32.totalorder %s47, %s50
      %p59 = scmp.eq.s32.totalorder %s15, 1
      %p60 = por %p58, %p59
      %p61 = scmp.ne.s32.totalorder %s50, %s51
      %p62 = scmp.eq.s32.totalorder %s15, 0
      %p63 = por %p61, %p62
      %p64 = scmp.ne.s32.totalorder %s50, %s51
      %p65 = scmp.eq.s32.totalorder %s16, 1
      %p66 = por %p64, %p65
      %p68 = scmp.ne.s32.totalorder %s51, %s67
      %p69 = scmp.eq.s32.totalorder %s16, 0
      %p70 = por %p68, %p69
      %s71 = ssub.s32 %s17, %s36
      %s72 = ssub.s32 %s18, %s32
      %s73 = sor.u32 %s71, %s72
      %p74 = scmp.eq.s32.totalorder %s73, 0
      %s76 = sadd.s32 %s75, 1
      %s77 = scalar_select %p74, %s75, %s76
      %p80 = pneg %p74
      %p81 = scmp.eq.s32.totalorder %s10, 1
      %p82 = por %p80, %p81
      %p83 = scmp.ne.s32.totalorder %s75, %s78
      %p84 = scmp.eq.s32.totalorder %s10, 0
      %p85 = por %p83, %p84
      %p86 = scmp.ne.s32.totalorder %s75, %s78
      %p87 = scmp.eq.s32.totalorder %s15, 1
      %p88 = por %p86, %p87
      %p89 = scmp.ne.s32.totalorder %s78, %s79
      %p90 = scmp.eq.s32.totalorder %s15, 0
      %p91 = por %p89, %p90
      %p92 = scmp.ne.s32.totalorder %s78, %s79
      %p93 = scmp.eq.s32.totalorder %s16, 1
      %p94 = por %p92, %p93
      %p96 = scmp.ne.s32.totalorder %s79, %s95
      %p97 = scmp.eq.s32.totalorder %s16, 0
      %p98 = por %p96, %p97
      %p99 = scmp.le.s32.totalorder 1, %s10
      %p100 = scmp.lt.s32.totalorder %s10, 3
      %p101 = pnand %p99, %p100
      %p102 = pneg %p101
      // Predicated region
      $region9: #{tpu_custom_call.1} parent=5 // pred_check
        _
      $region10: #{tpu_custom_call.1} parent=5 // pred_check_branch
        %104 = sbr.rel (%p101) target = $region12
      $region11: #{tpu_custom_call.1} parent=5 // pred_region
        %s105 = ssub.s32 %s10, 1
      $region12: #{tpu_custom_call.1} parent=5 // pred_fallthru
        _
      %p106 = scmp.lt.s32.totalorder %s10, 2
      // Predicated region
      $region13: #{tpu_custom_call.1} parent=5 // pred_check
        %p107 = pneg %p106
      $region14: #{tpu_custom_call.1} parent=5 // pred_check_branch
        %109 = sbr.rel (%p107) target = $region16
      $region15: #{tpu_custom_call.1} parent=5 // pred_region
        // Predicated region
        $region17: #{tpu_custom_call.1} parent=15 // pred_check
          %p110 = pneg %p57
        $region18: #{tpu_custom_call.1} parent=15 // pred_check_branch
          %112 = sbr.rel (%p110) target = $region20
        $region19: #{tpu_custom_call.1} parent=15 // pred_region
          %s113 = sadd.s32 %s18, %s19
          %p114 = scmp.lt.s32.totalorder %s113, 0
          %s115 = scalar_select %p114, %s113, 0
          %s116 = smul.u32 25, %s115
          %p117 = scmp.lt.s32.totalorder %s17, 1
          %s118 = scalar_select %p117, %s17, 1
          %p119 = scmp.lt.s32.totalorder %s116, 24
          %s120 = scalar_select %p119, %s116, 24
          %s121 = smul.addr %s118, 25
          %s122 = sadd.s32 %s120, %s121
          %s123 = smul.addr %s122, 8
          %s124 = scalar_lea.vmem %s0, %s123
          %s125 = sadd.s32 %s18, %s19
          %p126 = scmp.lt.s32.totalorder %s125, 0
          %s127 = scalar_select %p126, %s125, 0
          %s128 = smul.u32 25, %s127
        $region20: #{tpu_custom_call.1} parent=15 // pred_fallthru
          _
      $region16: #{tpu_custom_call.1} parent=5 // pred_fallthru
        _
      %p129 = scmp.le.s32.totalorder 1, %s10
      %p130 = scmp.lt.s32.totalorder %s10, 3
      %p131 = pnand %p129, %p130
      %p132 = pneg %p131
      // Predicated region
      $region21: #{tpu_custom_call.1} parent=5 // pred_check
        _
      $region22: #{tpu_custom_call.1} parent=5 // pred_check_branch
        %134 = sbr.rel (%p131) target = $region24
      $region23: #{tpu_custom_call.1} parent=5 // pred_region
        %s135 = ssub.s32 %s10, 1
        %s136 = sadd.s32 %s21, %s22
        %p137 = scmp.lt.s32.totalorder %s136, 0
        %s138 = scalar_select %p137, %s136, 0
        %s139 = smul.u32 25, %s138
        %p140 = scmp.lt.s32.totalorder %s20, 1
        %s141 = scalar_select %p140, %s20, 1
        %p142 = scmp.lt.s32.totalorder %s139, 24
        %s143 = scalar_select %p142, %s139, 24
        %s144 = smul.addr %s141, 25
        %s145 = sadd.s32 %s143, %s144
        %s146 = smul.addr %s145, 8
        %s147 = scalar_lea.vmem %s0, %s146
        %p148 = pneg %p63
        %p149 = pneg %p60
        %p150 = pneg %p91
        %p151 = pneg %p88
        %s152 = sand.u32 %s78, 1
        %s153 = scalar_lea.sflag [#allocation3], %s152
        %s154 = sand.u32 %s78, 1
        %s155 = smul.addr %s154, 8
        %s156 = scalar_lea.vmem [#allocation2], %s155
        %s157 = sadd.s32 %s21, %s22
        %p158 = scmp.lt.s32.totalorder %s157, 0
        %s159 = scalar_select %p158, %s157, 0
        %s160 = smul.u32 25, %s159
        %p161 = scmp.lt.s32.totalorder %s20, 1
        %s162 = scalar_select %p161, %s20, 1
        %p163 = scmp.lt.s32.totalorder %s160, 24
        %s164 = scalar_select %p163, %s160, 24
        %s165 = smul.addr %s162, 25
        %s166 = sadd.s32 %s164, %s165
        %s167 = smul.addr %s166, 8
        %s168 = scalar_lea.vmem %s0, %s167
        %s169 = sadd.s32 %s21, %s22
        %p170 = scmp.lt.s32.totalorder %s169, 0
        %s171 = scalar_select %p170, %s169, 0
        %s172 = smul.u32 25, %s171
        %p173 = scmp.eq.s32.totalorder %s22, 0
        // Predicated region
        $region25: #{tpu_custom_call.1} parent=23 // pred_check
          %p174 = pneg %p173
        $region26: #{tpu_custom_call.1} parent=23 // pred_check_branch
          %176 = sbr.rel (%p174) target = $region28
        $region27: #{tpu_custom_call.1} parent=23 // pred_region
          %177 = vst [vmem:[%s156] sm:$0xff] -inf
        $region28: #{tpu_custom_call.1} parent=23 // pred_fallthru
          _
        %v178 = vld [vmem:[%s168] sm:$0xff]
        %v179 = vld [vmem:[%s168 + $0x8] sm:$0xff]
        %v180 = vld [vmem:[%s168 + $0x10] sm:$0xff]
        %v181 = vld [vmem:[%s168 + $0x18] sm:$0xff]
        %v182 = vld [vmem:[%s168 + $0x20] sm:$0xff]
        %v183 = vld [vmem:[%s168 + $0x28] sm:$0xff]
        %v184 = vld [vmem:[%s168 + $0x30] sm:$0xff]
        %v185 = vld [vmem:[%s168 + $0x38] sm:$0xff]
        %v186 = vld [vmem:[%s168 + $0x40] sm:$0xff]
        %v187 = vld [vmem:[%s168 + $0x48] sm:$0xff]
        %v188 = vld [vmem:[%s168 + $0x50] sm:$0xff]
        %v189 = vld [vmem:[%s168 + $0x58] sm:$0xff]
        %v190 = vld [vmem:[%s168 + $0x60] sm:$0xff]
        %v191 = vld [vmem:[%s168 + $0x68] sm:$0xff]
        %v192 = vld [vmem:[%s168 + $0x70] sm:$0xff]
        %v193 = vld [vmem:[%s168 + $0x78] sm:$0xff]
        %v194 = vld [vmem:[%s168 + $0x80] sm:$0xff]
        %v195 = vld [vmem:[%s168 + $0x88] sm:$0xff]
        %v196 = vld [vmem:[%s168 + $0x90] sm:$0xff]
        %v197 = vld [vmem:[%s168 + $0x98] sm:$0xff]
        %v198 = vld [vmem:[%s168 + $0xa0] sm:$0xff]
        %v199 = vld [vmem:[%s168 + $0xa8] sm:$0xff]
        %v200 = vld [vmem:[%s168 + $0xb0] sm:$0xff]
        %v201 = vld [vmem:[%s168 + $0xb8] sm:$0xff]
        %v202 = vld [vmem:[%s168 + $0xc0] sm:$0xff]
        %vm203 = vcmask 130088
        %v204 = vsel %vm203, %v178, -inf
        %205 = vmax.xlane.f32.xlu0 %v204
        %v206 = vpop.xlane.xlu0 %205
        %v207 = vsel %vm203, %v179, -inf
        %208 = vmax.xlane.f32.xlu0 %v207
        %v209 = vpop.xlane.xlu0 %208
        %v210 = vsel %vm203, %v180, -inf
        %211 = vmax.xlane.f32.xlu0 %v210
        %v212 = vpop.xlane.xlu0 %211
        %v213 = vsel %vm203, %v181, -inf
        %214 = vmax.xlane.f32.xlu0 %v213
        %v215 = vpop.xlane.xlu0 %214
        %v216 = vsel %vm203, %v182, -inf
        %217 = vmax.xlane.f32.xlu0 %v216
        %v218 = vpop.xlane.xlu0 %217
        %v219 = vsel %vm203, %v183, -inf
        %220 = vmax.xlane.f32.xlu0 %v219
        %v221 = vpop.xlane.xlu0 %220
        %v222 = vsel %vm203, %v184, -inf
        %223 = vmax.xlane.f32.xlu0 %v222
        %v224 = vpop.xlane.xlu0 %223
        %v225 = vsel %vm203, %v185, -inf
        %226 = vmax.xlane.f32.xlu0 %v225
        %v227 = vpop.xlane.xlu0 %226
        %v228 = vsel %vm203, %v186, -inf
        %229 = vmax.xlane.f32.xlu0 %v228
        %v230 = vpop.xlane.xlu0 %229
        %v231 = vsel %vm203, %v187, -inf
        %232 = vmax.xlane.f32.xlu0 %v231
        %v233 = vpop.xlane.xlu0 %232
        %v234 = vsel %vm203, %v188, -inf
        %235 = vmax.xlane.f32.xlu0 %v234
        %v236 = vpop.xlane.xlu0 %235
        %v237 = vsel %vm203, %v189, -inf
        %238 = vmax.xlane.f32.xlu0 %v237
        %v239 = vpop.xlane.xlu0 %238
        %v240 = vsel %vm203, %v190, -inf
        %241 = vmax.xlane.f32.xlu0 %v240
        %v242 = vpop.xlane.xlu0 %241
        %v243 = vsel %vm203, %v191, -inf
        %244 = vmax.xlane.f32.xlu0 %v243
        %v245 = vpop.xlane.xlu0 %244
        %v246 = vsel %vm203, %v192, -inf
        %247 = vmax.xlane.f32.xlu0 %v246
        %v248 = vpop.xlane.xlu0 %247
        %v249 = vsel %vm203, %v193, -inf
        %250 = vmax.xlane.f32.xlu0 %v249
        %v251 = vpop.xlane.xlu0 %250
        %v252 = vsel %vm203, %v194, -inf
        %253 = vmax.xlane.f32.xlu0 %v252
        %v254 = vpop.xlane.xlu0 %253
        %v255 = vsel %vm203, %v195, -inf
        %256 = vmax.xlane.f32.xlu0 %v255
        %v257 = vpop.xlane.xlu0 %256
        %v258 = vsel %vm203, %v196, -inf
        %259 = vmax.xlane.f32.xlu0 %v258
        %v260 = vpop.xlane.xlu0 %259
        %v261 = vsel %vm203, %v197, -inf
        %262 = vmax.xlane.f32.xlu0 %v261
        %v263 = vpop.xlane.xlu0 %262
        %v264 = vsel %vm203, %v198, -inf
        %265 = vmax.xlane.f32.xlu0 %v264
        %v266 = vpop.xlane.xlu0 %265
        %v267 = vsel %vm203, %v199, -inf
        %268 = vmax.xlane.f32.xlu0 %v267
        %v269 = vpop.xlane.xlu0 %268
        %v270 = vsel %vm203, %v200, -inf
        %271 = vmax.xlane.f32.xlu0 %v270
        %v272 = vpop.xlane.xlu0 %271
        %v273 = vsel %vm203, %v201, -inf
        %274 = vmax.xlane.f32.xlu0 %v273
        %v275 = vpop.xlane.xlu0 %274
        %v276 = vsel %vm203, %v202, -inf
        %277 = vmax.xlane.f32.xlu0 %v276
        %v278 = vpop.xlane.xlu0 %277
        %v279 = vsub.f32 %v178, %v206
        %v280 = vsub.f32 %v179, %v209
        %v281 = vsub.f32 %v180, %v212
        %v282 = vsub.f32 %v181, %v215
        %v283 = vsub.f32 %v182, %v218
        %v284 = vsub.f32 %v183, %v221
        %v285 = vsub.f32 %v184, %v224
        %v286 = vsub.f32 %v185, %v227
        %v287 = vsub.f32 %v186, %v230
        %v288 = vsub.f32 %v187, %v233
        %v289 = vsub.f32 %v188, %v236
        %v290 = vsub.f32 %v189, %v239
        %v291 = vsub.f32 %v190, %v242
        %v292 = vsub.f32 %v191, %v245
        %v293 = vsub.f32 %v192, %v248
        %v294 = vsub.f32 %v193, %v251
        %v295 = vsub.f32 %v194, %v254
        %v296 = vsub.f32 %v195, %v257
        %v297 = vsub.f32 %v196, %v260
        %v298 = vsub.f32 %v197, %v263
        %v299 = vsub.f32 %v198, %v266
        %v300 = vsub.f32 %v199, %v269
        %v301 = vsub.f32 %v200, %v272
        %v302 = vsub.f32 %v201, %v275
        %v303 = vsub.f32 %v202, %v278
        %v304 = vmul.f32 %v279, 1.442695
        %v305 = vpow.pop %v304
        %v306 = vmul.f32 %v280, 1.442695
        %v307 = vpow.pop %v306
        %v308 = vmul.f32 %v281, 1.442695
        %v309 = vpow.pop %v308
        %v310 = vmul.f32 %v282, 1.442695
        %v311 = vpow.pop %v310
        %v312 = vmul.f32 %v283, 1.442695
        %v313 = vpow.pop %v312
        %v314 = vmul.f32 %v284, 1.442695
        %v315 = vpow.pop %v314
        %v316 = vmul.f32 %v285, 1.442695
        %v317 = vpow.pop %v316
        %v318 = vmul.f32 %v286, 1.442695
        %v319 = vpow.pop %v318
        %v320 = vmul.f32 %v287, 1.442695
        %v321 = vpow.pop %v320
        %v322 = vmul.f32 %v288, 1.442695
        %v323 = vpow.pop %v322
        %v324 = vmul.f32 %v289, 1.442695
        %v325 = vpow.pop %v324
        %v326 = vmul.f32 %v290, 1.442695
        %v327 = vpow.pop %v326
        %v328 = vmul.f32 %v291, 1.442695
        %v329 = vpow.pop %v328
        %v330 = vmul.f32 %v292, 1.442695
        %v331 = vpow.pop %v330
        %v332 = vmul.f32 %v293, 1.442695
        %v333 = vpow.pop %v332
        %v334 = vmul.f32 %v294, 1.442695
        %v335 = vpow.pop %v334
        %v336 = vmul.f32 %v295, 1.442695
        %v337 = vpow.pop %v336
        %v338 = vmul.f32 %v296, 1.442695
        %v339 = vpow.pop %v338
        %v340 = vmul.f32 %v297, 1.442695
        %v341 = vpow.pop %v340
        %v342 = vmul.f32 %v298, 1.442695
        %v343 = vpow.pop %v342
        %v344 = vmul.f32 %v299, 1.442695
        %v345 = vpow.pop %v344
        %v346 = vmul.f32 %v300, 1.442695
        %v347 = vpow.pop %v346
        %v348 = vmul.f32 %v301, 1.442695
        %v349 = vpow.pop %v348
        %v350 = vmul.f32 %v302, 1.442695
        %v351 = vpow.pop %v350
        %v352 = vmul.f32 %v303, 1.442695
        %v353 = vpow.pop %v352
        %379 = vrot.lane.b32.xlu0 %v305, 123
        %v380 = vpop.permute.xlu0 %379
        %381 = vrot.lane.b32.xlu0 %v307, 123
        %v382 = vpop.permute.xlu0 %381
        %383 = vrot.lane.b32.xlu0 %v309, 123
        %v384 = vpop.permute.xlu0 %383
        %385 = vrot.lane.b32.xlu0 %v311, 123
        %v386 = vpop.permute.xlu0 %385
        %387 = vrot.lane.b32.xlu0 %v313, 123
        %v388 = vpop.permute.xlu0 %387
        %389 = vrot.lane.b32.xlu0 %v315, 123
        %v390 = vpop.permute.xlu0 %389
        %391 = vrot.lane.b32.xlu0 %v317, 123
        %v392 = vpop.permute.xlu0 %391
        %393 = vrot.lane.b32.xlu0 %v319, 123
        %v394 = vpop.permute.xlu0 %393
        %395 = vrot.lane.b32.xlu0 %v321, 123
        %v396 = vpop.permute.xlu0 %395
        %397 = vrot.lane.b32.xlu0 %v323, 123
        %v398 = vpop.permute.xlu0 %397
        %399 = vrot.lane.b32.xlu0 %v325, 123
        %v400 = vpop.permute.xlu0 %399
        %401 = vrot.lane.b32.xlu0 %v327, 123
        %v402 = vpop.permute.xlu0 %401
        %403 = vrot.lane.b32.xlu0 %v329, 123
        %v404 = vpop.permute.xlu0 %403
        %405 = vrot.lane.b32.xlu0 %v331, 123
        %v406 = vpop.permute.xlu0 %405
        %407 = vrot.lane.b32.xlu0 %v333, 123
        %v408 = vpop.permute.xlu0 %407
        %409 = vrot.lane.b32.xlu0 %v335, 123
        %v410 = vpop.permute.xlu0 %409
        %411 = vrot.lane.b32.xlu0 %v337, 123
        %v412 = vpop.permute.xlu0 %411
        %413 = vrot.lane.b32.xlu0 %v339, 123
        %v414 = vpop.permute.xlu0 %413
        %415 = vrot.lane.b32.xlu0 %v341, 123
        %v416 = vpop.permute.xlu0 %415
        %417 = vrot.lane.b32.xlu0 %v343, 123
        %v418 = vpop.permute.xlu0 %417
        %419 = vrot.lane.b32.xlu0 %v345, 123
        %v420 = vpop.permute.xlu0 %419
        %421 = vrot.lane.b32.xlu0 %v347, 123
        %v422 = vpop.permute.xlu0 %421
        %423 = vrot.lane.b32.xlu0 %v349, 123
        %v424 = vpop.permute.xlu0 %423
        %425 = vrot.lane.b32.xlu0 %v351, 123
        %v426 = vpop.permute.xlu0 %425
        %427 = vrot.lane.b32.xlu0 %v353, 123
        %v428 = vpop.permute.xlu0 %427
        %vm454 = vcmask 89088
        %v455 = vsel %vm454, %v380, 0.0
        %456 = vadd.xlane.f32.xlu0 %v455
        %v457 = vpop.xlane.xlu0 %456
        %v458 = vsel %vm454, %v382, 0.0
        %459 = vadd.xlane.f32.xlu0 %v458
        %v460 = vpop.xlane.xlu0 %459
        %v461 = vsel %vm454, %v384, 0.0
        %462 = vadd.xlane.f32.xlu0 %v461
        %v463 = vpop.xlane.xlu0 %462
        %v464 = vsel %vm454, %v386, 0.0
        %465 = vadd.xlane.f32.xlu0 %v464
        %v466 = vpop.xlane.xlu0 %465
        %v467 = vsel %vm454, %v388, 0.0
        %468 = vadd.xlane.f32.xlu0 %v467
        %v469 = vpop.xlane.xlu0 %468
        %v470 = vsel %vm454, %v390, 0.0
        %471 = vadd.xlane.f32.xlu0 %v470
        %v472 = vpop.xlane.xlu0 %471
        %v473 = vsel %vm454, %v392, 0.0
        %474 = vadd.xlane.f32.xlu0 %v473
        %v475 = vpop.xlane.xlu0 %474
        %v476 = vsel %vm454, %v394, 0.0
        %477 = vadd.xlane.f32.xlu0 %v476
        %v478 = vpop.xlane.xlu0 %477
        %v479 = vsel %vm454, %v396, 0.0
        %480 = vadd.xlane.f32.xlu0 %v479
        %v481 = vpop.xlane.xlu0 %480
        %v482 = vsel %vm454, %v398, 0.0
        %483 = vadd.xlane.f32.xlu0 %v482
        %v484 = vpop.xlane.xlu0 %483
        %v485 = vsel %vm454, %v400, 0.0
        %486 = vadd.xlane.f32.xlu0 %v485
        %v487 = vpop.xlane.xlu0 %486
        %v488 = vsel %vm454, %v402, 0.0
        %489 = vadd.xlane.f32.xlu0 %v488
        %v490 = vpop.xlane.xlu0 %489
        %v491 = vsel %vm454, %v404, 0.0
        %492 = vadd.xlane.f32.xlu0 %v491
        %v493 = vpop.xlane.xlu0 %492
        %v494 = vsel %vm454, %v406, 0.0
        %495 = vadd.xlane.f32.xlu0 %v494
        %v496 = vpop.xlane.xlu0 %495
        %v497 = vsel %vm454, %v408, 0.0
        %498 = vadd.xlane.f32.xlu0 %v497
        %v499 = vpop.xlane.xlu0 %498
        %v500 = vsel %vm454, %v410, 0.0
        %501 = vadd.xlane.f32.xlu0 %v500
        %v502 = vpop.xlane.xlu0 %501
        %v503 = vsel %vm454, %v412, 0.0
        %504 = vadd.xlane.f32.xlu0 %v503
        %v505 = vpop.xlane.xlu0 %504
        %v506 = vsel %vm454, %v414, 0.0
        %507 = vadd.xlane.f32.xlu0 %v506
        %v508 = vpop.xlane.xlu0 %507
        %v509 = vsel %vm454, %v416, 0.0
        %510 = vadd.xlane.f32.xlu0 %v509
        %v511 = vpop.xlane.xlu0 %510
        %v512 = vsel %vm454, %v418, 0.0
        %513 = vadd.xlane.f32.xlu0 %v512
        %v514 = vpop.xlane.xlu0 %513
        %v515 = vsel %vm454, %v420, 0.0
        %516 = vadd.xlane.f32.xlu0 %v515
        %v517 = vpop.xlane.xlu0 %516
        %v518 = vsel %vm454, %v422, 0.0
        %519 = vadd.xlane.f32.xlu0 %v518
        %v520 = vpop.xlane.xlu0 %519
        %v521 = vsel %vm454, %v424, 0.0
        %522 = vadd.xlane.f32.xlu0 %v521
        %v523 = vpop.xlane.xlu0 %522
        %v524 = vsel %vm454, %v426, 0.0
        %525 = vadd.xlane.f32.xlu0 %v524
        %v526 = vpop.xlane.xlu0 %525
        %v527 = vsel %vm454, %v428, 0.0
        %528 = vadd.xlane.f32.xlu0 %v527
        %v529 = vpop.xlane.xlu0 %528
        %v530 = vrcp.pop %v457
        %v531 = vrcp.pop %v460
        %v532 = vrcp.pop %v463
        %v533 = vrcp.pop %v466
        %v534 = vrcp.pop %v469
        %v535 = vrcp.pop %v472
        %v536 = vrcp.pop %v475
        %v537 = vrcp.pop %v478
        %v538 = vrcp.pop %v481
        %v539 = vrcp.pop %v484
        %v540 = vrcp.pop %v487
        %v541 = vrcp.pop %v490
        %v542 = vrcp.pop %v493
        %v543 = vrcp.pop %v496
        %v544 = vrcp.pop %v499
        %v545 = vrcp.pop %v502
        %v546 = vrcp.pop %v505
        %v547 = vrcp.pop %v508
        %v548 = vrcp.pop %v511
        %v549 = vrcp.pop %v514
        %v550 = vrcp.pop %v517
        %v551 = vrcp.pop %v520
        %v552 = vrcp.pop %v523
        %v553 = vrcp.pop %v526
        %v554 = vrcp.pop %v529
        %v555 = vmul.f32 %v305, %v530
        %v556 = vmul.f32 %v307, %v531
        %v557 = vmul.f32 %v309, %v532
        %v558 = vmul.f32 %v311, %v533
        %v559 = vmul.f32 %v313, %v534
        %v560 = vmul.f32 %v315, %v535
        %v561 = vmul.f32 %v317, %v536
        %v562 = vmul.f32 %v319, %v537
        %v563 = vmul.f32 %v321, %v538
        %v564 = vmul.f32 %v323, %v539
        %v565 = vmul.f32 %v325, %v540
        %v566 = vmul.f32 %v327, %v541
        %v567 = vmul.f32 %v329, %v542
        %v568 = vmul.f32 %v331, %v543
        %v569 = vmul.f32 %v333, %v544
        %v570 = vmul.f32 %v335, %v545
        %v571 = vmul.f32 %v337, %v546
        %v572 = vmul.f32 %v339, %v547
        %v573 = vmul.f32 %v341, %v548
        %v574 = vmul.f32 %v343, %v549
        %v575 = vmul.f32 %v345, %v550
        %v576 = vmul.f32 %v347, %v551
        %v577 = vmul.f32 %v349, %v552
        %v578 = vmul.f32 %v351, %v553
        %v579 = vmul.f32 %v353, %v554
        %605 = vrot.lane.b32.xlu0 %v555, 126
        %v606 = vpop.permute.xlu0 %605
        %607 = vrot.lane.b32.xlu0 %v556, 126
        %v608 = vpop.permute.xlu0 %607
        %609 = vrot.lane.b32.xlu0 %v557, 126
        %v610 = vpop.permute.xlu0 %609
        %611 = vrot.lane.b32.xlu0 %v558, 126
        %v612 = vpop.permute.xlu0 %611
        %613 = vrot.lane.b32.xlu0 %v559, 126
        %v614 = vpop.permute.xlu0 %613
        %615 = vrot.lane.b32.xlu0 %v560, 126
        %v616 = vpop.permute.xlu0 %615
        %617 = vrot.lane.b32.xlu0 %v561, 126
        %v618 = vpop.permute.xlu0 %617
        %619 = vrot.lane.b32.xlu0 %v562, 126
        %v620 = vpop.permute.xlu0 %619
        %621 = vrot.lane.b32.xlu0 %v563, 126
        %v622 = vpop.permute.xlu0 %621
        %623 = vrot.lane.b32.xlu0 %v564, 126
        %v624 = vpop.permute.xlu0 %623
        %625 = vrot.lane.b32.xlu0 %v565, 126
        %v626 = vpop.permute.xlu0 %625
        %627 = vrot.lane.b32.xlu0 %v566, 126
        %v628 = vpop.permute.xlu0 %627
        %629 = vrot.lane.b32.xlu0 %v567, 126
        %v630 = vpop.permute.xlu0 %629
        %631 = vrot.lane.b32.xlu0 %v568, 126
        %v632 = vpop.permute.xlu0 %631
        %633 = vrot.lane.b32.xlu0 %v569, 126
        %v634 = vpop.permute.xlu0 %633
        %635 = vrot.lane.b32.xlu0 %v570, 126
        %v636 = vpop.permute.xlu0 %635
        %637 = vrot.lane.b32.xlu0 %v571, 126
        %v638 = vpop.permute.xlu0 %637
        %639 = vrot.lane.b32.xlu0 %v572, 126
        %v640 = vpop.permute.xlu0 %639
        %641 = vrot.lane.b32.xlu0 %v573, 126
        %v642 = vpop.permute.xlu0 %641
        %643 = vrot.lane.b32.xlu0 %v574, 126
        %v644 = vpop.permute.xlu0 %643
        %645 = vrot.lane.b32.xlu0 %v575, 126
        %v646 = vpop.permute.xlu0 %645
        %647 = vrot.lane.b32.xlu0 %v576, 126
        %v648 = vpop.permute.xlu0 %647
        %649 = vrot.lane.b32.xlu0 %v577, 126
        %v650 = vpop.permute.xlu0 %649
        %651 = vrot.lane.b32.xlu0 %v578, 126
        %v652 = vpop.permute.xlu0 %651
        %653 = vrot.lane.b32.xlu0 %v579, 126
        %v654 = vpop.permute.xlu0 %653
        %v680 = vmul.f32 %v178, %v606
        %v681 = vmul.f32 %v179, %v608
        %v682 = vmul.f32 %v180, %v610
        %v683 = vmul.f32 %v181, %v612
        %v684 = vmul.f32 %v182, %v614
        %v685 = vmul.f32 %v183, %v616
        %v686 = vmul.f32 %v184, %v618
        %v687 = vmul.f32 %v185, %v620
        %v688 = vmul.f32 %v186, %v622
        %v689 = vmul.f32 %v187, %v624
        %v690 = vmul.f32 %v188, %v626
        %v691 = vmul.f32 %v189, %v628
        %v692 = vmul.f32 %v190, %v630
        %v693 = vmul.f32 %v191, %v632
        %v694 = vmul.f32 %v192, %v634
        %v695 = vmul.f32 %v193, %v636
        %v696 = vmul.f32 %v194, %v638
        %v697 = vmul.f32 %v195, %v640
        %v698 = vmul.f32 %v196, %v642
        %v699 = vmul.f32 %v197, %v644
        %v700 = vmul.f32 %v198, %v646
        %v701 = vmul.f32 %v199, %v648
        %v702 = vmul.f32 %v200, %v650
        %v703 = vmul.f32 %v201, %v652
        %v704 = vmul.f32 %v202, %v654
        %v705 = vld [vmem:[%s156] sm:$0xff]
        %vm706 = vcmask 39968
        %v707 = vsel %vm706, %v680, -inf
        %v708 = vsel %vm706, %v681, -inf
        %v709 = vsel %vm706, %v682, -inf
        %v710 = vsel %vm706, %v683, -inf
        %v711 = vsel %vm706, %v684, -inf
        %v712 = vmax.f32 %v707, %v711
        %v713 = vsel %vm706, %v685, -inf
        %v714 = vmax.f32 %v708, %v713
        %v715 = vsel %vm706, %v686, -inf
        %v716 = vmax.f32 %v709, %v715
        %v717 = vsel %vm706, %v687, -inf
        %v718 = vmax.f32 %v710, %v717
        %v719 = vsel %vm706, %v688, -inf
        %v720 = vmax.f32 %v712, %v719
        %v721 = vsel %vm706, %v689, -inf
        %v722 = vmax.f32 %v714, %v721
        %v723 = vsel %vm706, %v690, -inf
        %v724 = vmax.f32 %v716, %v723
        %v725 = vsel %vm706, %v691, -inf
        %v726 = vmax.f32 %v718, %v725
        %v727 = vsel %vm706, %v692, -inf
        %v728 = vmax.f32 %v720, %v727
        %v729 = vsel %vm706, %v693, -inf
        %v730 = vmax.f32 %v722, %v729
        %v731 = vsel %vm706, %v694, -inf
        %v732 = vmax.f32 %v724, %v731
        %v733 = vsel %vm706, %v695, -inf
        %v734 = vmax.f32 %v726, %v733
        %v735 = vsel %vm706, %v696, -inf
        %v736 = vmax.f32 %v728, %v735
        %v737 = vsel %vm706, %v697, -inf
        %v738 = vmax.f32 %v730, %v737
        %v739 = vsel %vm706, %v698, -inf
        %v740 = vmax.f32 %v732, %v739
        %v741 = vsel %vm706, %v699, -inf
        %v742 = vmax.f32 %v734, %v741
        %v743 = vsel %vm706, %v700, -inf
        %v744 = vmax.f32 %v736, %v743
        %v745 = vsel %vm706, %v701, -inf
        %v746 = vmax.f32 %v738, %v745
        %v747 = vsel %vm706, %v702, -inf
        %v748 = vmax.f32 %v740, %v747
        %v749 = vsel %vm706, %v703, -inf
        %v750 = vmax.f32 %v742, %v749
        %v751 = vsel %vm706, %v704, -inf
        %v752 = vmax.f32 %v744, %v751
        %v753 = vmax.f32 %v752, %v746
        %v754 = vmax.f32 %v748, %v750
        %v755 = vmax.f32 %v753, %v754
        %756 = vmax.xlane.f32.xlu0 %v755
        %v757 = vpop.xlane.xlu0 %756
        %v758 = vrot.slane %v757, 4
        %v759 = vmax.f32 %v757, %v758
        %v760 = vrot.slane %v759, 2
        %v761 = vmax.f32 %v759, %v760
        %v762 = vrot.slane %v761, 1
        %v763 = vmax.f32 %v761, %v762
        %s764 = vtos %v763
        %v765 = vstv %s764
        %v766 = vmax.f32 %v705, %v765
        %767 = vst [vmem:[%s156] sm:$0xff] %v766
        %s768 = sand.u32 %s78, 1
        %s769 = scalar_lea.sflag [#allocation3], %s768
        %s770 = sand.u32 %s78, 1
        %s771 = smul.addr %s770, 8
        %s772 = scalar_lea.vmem [#allocation2], %s771
        // Predicated region
        $region29: #{tpu_custom_call.1} parent=23 // pred_check
          %p773 = pneg %p88
        $region30: #{tpu_custom_call.1} parent=23 // pred_check_branch
          %775 = sbr.rel (%p773) target = $region32
        $region31: #{tpu_custom_call.1} parent=23 // pred_region
          %777 = vsyncadd %s769, 0
          %s778 = sadd.s32 %s21, %s20
          %s779 = smul.addr %s778, 8
          %s780 = scalar_lea.hbm %s1, %s779
          %s782 = sshll.u32 %s772, 4
          %s783 = int_to_ptr.vmem [resolvable:$true] %s782
          %s784 = sshll.u32 %s780, 4
          %s785 = int_to_ptr.hbm [resolvable:$true] %s784
          %787 = dma.vmem_to_hbm [thread:$0]  %s783, 128, %s785, %s769
        $region32: #{tpu_custom_call.1} parent=23 // pred_fallthru
          _
      $region24: #{tpu_custom_call.1} parent=5 // pred_fallthru
        _
      %p788 = scmp.le.s32.totalorder 2, %s10
      // Predicated region
      $region33: #{tpu_custom_call.1} parent=5 // pred_check
        %p789 = pneg %p788
      $region34: #{tpu_custom_call.1} parent=5 // pred_check_branch
        %791 = sbr.rel (%p789) target = $region36
      $region35: #{tpu_custom_call.1} parent=5 // pred_region
        %s792 = ssub.s32 %s10, 2
        // Predicated region
        $region37: #{tpu_custom_call.1} parent=35 // pred_check
          %p793 = pneg %p94
        $region38: #{tpu_custom_call.1} parent=35 // pred_check_branch
          %795 = sbr.rel (%p793) target = $region40
        $region39: #{tpu_custom_call.1} parent=35 // pred_region
          %s796 = sand.u32 %s79, 1
          %s797 = scalar_lea.sflag [#allocation3], %s796
          %s798 = sand.u32 %s79, 1
          %s799 = smul.addr %s798, 8
          %s800 = scalar_lea.vmem [#allocation2], %s799
          %802 = dma.done %s797, 128
        $region40: #{tpu_custom_call.1} parent=35 // pred_fallthru
          _
      $region36: #{tpu_custom_call.1} parent=5 // pred_fallthru
        _
    $region6: #{tpu_custom_call.1} parent=1 // loop_footer
      %s14 = sadd.s32 1, %s10
    $region7: #{tpu_custom_call.1} parent=1 // loop_footer_branch
      %9 = sbr.rel target = $region3
    $region8: #{tpu_custom_call.1} parent=1 // loop_exit
      _
    %803 = vsyncpa [#allocation3], 1
    %s804 = scalar_lea.sflag [#allocation3], 1
    %805 = vsyncpa %s804, 1

</llo_original>
